<compile_context>
chip_gen: v7x
topology: tpu7x:2x2x1
jax: 0.10.0
libtpu: 0.0.40
codegen_flags: <defaults>
</compile_context>

<pallas_src>
import math
from typing import NamedTuple

import numpy as np
import jax
import jax.numpy as jnp
from jax.experimental import pallas as pl
from jax.experimental.pallas import tpu as pltpu


def _round_up(x, m):
    return (x + m - 1) // m * m


def _pick_tile(dim, align, cap):
    """Largest `align`-multiple tile <= cap minimizing padding waste for `dim`."""
    dim_al = _round_up(max(int(dim), 1), align)
    cap = max(align, cap - cap % align)
    if dim_al <= cap:
        return dim_al                       # single block, zero waste
    candidates = range(align, cap + 1, align)
    # minimize padded extent; among ties take the largest tile (fewest steps)
    return min(candidates, key=lambda t: (_round_up(dim_al, t), -t))


def _vmem_limit_bytes():
    """Generation-aware scoped-VMEM limit (v7x: 64 MiB phys/TC, v5e/v6e: 128 MiB)."""
    cap = 0
    try:
        cap = int(pltpu.get_tpu_info().vmem_capacity_bytes)
    except Exception:
        cap = 0
    if cap <= 0:
        cap = 64 * 1024 * 1024              # conservative fallback
    # leave headroom for compiler-internal scratch; never ask for > 96 MiB
    return int(min(cap * 3 // 4, 96 * 1024 * 1024))


# ---------------------------------------------------------------------------
# Kernel: out[i,j] = bias[j] + sum_k x[i,k] * w[k,j]
# The output block index (i, j) is K-invariant, so o_ref (f32) stays resident
# in VMEM across the whole K axis and doubles as the accumulator — no scratch
# buffer and no separate finalize epilogue.
# ---------------------------------------------------------------------------
def _linear_kernel(x_ref, w_ref, b_ref, o_ref):
    # x_ref: (tm, tk)   activations
    # w_ref: (tk, tn)   weight, pre-transposed [K, N] layout
    # b_ref: (1,  tn)   f32 bias (K-invariant)
    # o_ref: (tm, tn)   f32 output / accumulator (K-invariant block index)
    k = pl.program_id(2)

    @pl.when(k == 0)
    def _():
        o_ref[...] = jnp.broadcast_to(b_ref[...], o_ref.shape)

    o_ref[...] += jnp.dot(x_ref[...], w_ref[...],
                          preferred_element_type=jnp.float32)


class LinearParams(NamedTuple):
    w_kn: jax.Array      # [K_pad, N_pad] compute dtype, padded + pre-transposed
    b_2d: jax.Array      # [1, N_pad] float32
    n: int               # logical outputSize
    k: int               # logical inputSize
    tn: int
    tk: int


def prepare_params(weight, bias, *, compute_dtype=jnp.bfloat16,
                   tn_max=1024, tk_max=2048):
    """One-time parameter prep: cast, zero-pad and transpose the constant weight.

    Hoisted out of the per-call path so each forward only pays HBM traffic for
    the activation and the (already prepared) weight stream.

    weight: [N, K] float32 (PyTorch nn.Linear layout), bias: [N] float32.
    """
    N, K = weight.shape
    assert bias.shape == (N,)
    tn = _pick_tile(N, 128, tn_max)
    tk = _pick_tile(K, 128, tk_max)
    N_pad = _round_up(N, tn)
    K_pad = _round_up(K, tk)

    w = weight.astype(compute_dtype)
    if (N_pad, K_pad) != (N, K):
        w = jnp.pad(w, ((0, N_pad - N), (0, K_pad - K)))
    w_kn = jnp.asarray(w.T)                 # [K_pad, N_pad]

    b = bias.astype(jnp.float32)
    if N_pad != N:
        b = jnp.pad(b, (0, N_pad - N))
    return LinearParams(w_kn=w_kn, b_2d=b.reshape(1, N_pad),
                        n=int(N), k=int(K), tn=int(tn), tk=int(tk))


def linear_forward(x, params: LinearParams, *, tm_max=512):
    """Compute x @ W^T + b with a tiled Pallas TPU kernel.

    x: [M, K] float32.  Returns [M, N] float32.
    """
    M, K = x.shape
    assert K == params.k, "inputSize mismatch"
    K_pad, N_pad = params.w_kn.shape
    tn, tk = params.tn, params.tk
    compute_dtype = params.w_kn.dtype
    in_bytes = jnp.dtype(compute_dtype).itemsize

    tm = _pick_tile(M, 8, tm_max)
    M_pad = _round_up(M, tm)

    # v7x shards the "parallel" grid axes across its 2 TensorCores: make sure
    # there are >= 2 parallel blocks when the shape allows it (neutral on
    # single-TC v5e/v6e).  Halving tn/tm keeps divisibility of the padded dims.
    if (M_pad // tm) * (N_pad // tn) < 2:
        if tn % 256 == 0:
            tn //= 2
        elif tm % 16 == 0:
            tm //= 2

    # Only the activation is touched per call (cast + pad); weight/bias are
    # already prepared.  Zero K-padding contributes nothing to the contraction.
    x_lp = x.astype(compute_dtype)
    if (M_pad, K_pad) != (M, K):
        x_lp = jnp.pad(x_lp, ((0, M_pad - M), (0, K_pad - K)))

    grid = (M_pad // tm, N_pad // tn, K_pad // tk)

    cost = pl.CostEstimate(
        flops=2 * M_pad * N_pad * K_pad,
        transcendentals=0,
        # Account for re-reads: x is streamed once per N tile, w once per M tile.
        bytes_accessed=(x_lp.size * in_bytes * (N_pad // tn)
                        + params.w_kn.size * in_bytes * (M_pad // tm)
                        + params.b_2d.size * 4 * (N_pad // tn)
                        + M_pad * N_pad * 4),
    )

    out_pad = pl.pallas_call(
        _linear_kernel,
        out_shape=jax.ShapeDtypeStruct((M_pad, N_pad), jnp.float32),
        grid_spec=pltpu.PrefetchScalarGridSpec(
            num_scalar_prefetch=0,
            grid=grid,
            in_specs=[
                pl.BlockSpec((tm, tk), lambda i, j, k: (i, k)),   # activations
                # TODO(synk): if profiling shows exposed weight DMA at small M,
                # add pipeline_mode=pl.Buffered(3) to the weight spec below.
                pl.BlockSpec((tk, tn), lambda i, j, k: (k, j)),   # weight [K, N]
                pl.BlockSpec((1, tn), lambda i, j, k: (0, j)),    # bias (K-invariant)
            ],
            out_specs=pl.BlockSpec((tm, tn), lambda i, j, k: (i, j)),
        ),
        compiler_params=pltpu.CompilerParams(
            dimension_semantics=("parallel", "parallel", "arbitrary"),
            vmem_limit_bytes=_vmem_limit_bytes(),
        ),
        cost_estimate=cost,
    )(x_lp, params.w_kn, params.b_2d)

    if (M_pad, N_pad) != (M, params.n):
        out_pad = out_pad[:M, :params.n]
    return out_pad


if __name__ == "__main__":
    # NOTE: at these toy sizes the kernel is pure launch/DMA overhead; the
    # tiling/prep structure targets realistic M/N/K and is merely exercised here.
    inputSize, outputSize, batch = 32, 16, 8

    key = jax.random.PRNGKey(0)
    kx, kw, kb = jax.random.split(key, 3)

    # Mimic nn.Linear's uniform(-1/sqrt(K), 1/sqrt(K)) init, deterministically.
    bound = 1.0 / math.sqrt(inputSize)
    weight = jax.random.uniform(kw, (outputSize, inputSize), jnp.float32, -bound, bound)
    bias = jax.random.uniform(kb, (outputSize,), jnp.float32, -bound, bound)
    x = jax.random.normal(kx, (batch, inputSize), jnp.float32)

    # --- float32 compute path (matches PyTorch nn.Linear numerics) -----------
    params_f32 = prepare_params(weight, bias, compute_dtype=jnp.float32)
    out = jax.block_until_ready(linear_forward(x, params_f32))
    ref = (np.asarray(x, np.float64) @ np.asarray(weight, np.float64).T
           + np.asarray(bias, np.float64))
    assert out.shape == (batch, outputSize)
    assert np.allclose(np.asarray(out, np.float64), ref, atol=5e-3, rtol=5e-3), \
        float(np.max(np.abs(np.asarray(out, np.float64) - ref)))

    # --- bfloat16 compute path, multi-tile grid (exercises K accumulation,
    #     bias init, and padding of awkward shapes) ---------------------------
    M2, K2, N2 = 96, 384, 272
    kx2, kw2, kb2 = jax.random.split(jax.random.PRNGKey(1), 3)
    w2 = jax.random.normal(kw2, (N2, K2), jnp.float32) * 0.05
    b2 = jax.random.normal(kb2, (N2,), jnp.float32)
    x2 = jax.random.normal(kx2, (M2, K2), jnp.float32)

    params_bf16 = prepare_params(w2, b2, compute_dtype=jnp.bfloat16,
                                 tn_max=128, tk_max=128)
    out2 = jax.block_until_ready(linear_forward(x2, params_bf16, tm_max=64))
    ref2 = (x2.astype(jnp.bfloat16).astype(jnp.float32)
            @ w2.astype(jnp.bfloat16).astype(jnp.float32).T) + b2
    assert out2.shape == (M2, N2)
    assert jnp.allclose(out2, ref2, atol=5e-2, rtol=5e-2), \
        float(jnp.max(jnp.abs(out2 - ref2)))

    print("KERNEL_OK")
</pallas_src>

<mosaic_0001>
module attributes {stable_mosaic.version = 11 : i64} {
  func.func @_linear_kernel(%arg0: i32, %arg1: i32, %arg2: i32, %arg3: memref<8x128xf32, #tpu.memory_space<vmem>>, %arg4: memref<128x128xf32, #tpu.memory_space<vmem>>, %arg5: memref<1x128xf32, #tpu.memory_space<vmem>>, %arg6: memref<8x128xf32, #tpu.memory_space<vmem>>) attributes {dimension_semantics = [#tpu.dimension_semantics<parallel>, #tpu.dimension_semantics<parallel>, #tpu.dimension_semantics<arbitrary>], iteration_bounds = array<i64: 1, 1, 1>, scalar_prefetch = 0 : i64, scratch_operands = 0 : i64, tpu.core_type = #tpu.core_type<tc>, window_params = [{transform_indices = @transform_0, window_bounds = array<i64: 8, 128>}, {transform_indices = @transform_1, window_bounds = array<i64: 128, 128>}, {transform_indices = @transform_2, window_bounds = array<i64: 1, 128>}, {transform_indices = @transform_3, window_bounds = array<i64: 8, 128>}]} {
    %c0_i32 = arith.constant 0 : i32
    %0 = arith.cmpi eq, %arg2, %c0_i32 : i32
    %1 = arith.extui %0 : i1 to i32
    %c0_i32_0 = arith.constant 0 : i32
    %2 = arith.cmpi ne, %1, %c0_i32_0 : i32
    scf.if %2 {
      %c0_8 = arith.constant 0 : index
      %c0_9 = arith.constant 0 : index
      %9 = vector.load %arg5[%c0_8, %c0_9] : memref<1x128xf32, #tpu.memory_space<vmem>>, vector<1x128xf32>
      %10 = vector.shape_cast %9 : vector<1x128xf32> to vector<1x128xf32>
      %11 = vector.broadcast %10 : vector<1x128xf32> to vector<8x128xf32>
      %c0_10 = arith.constant 0 : index
      %c0_11 = arith.constant 0 : index
      %12 = vector.load %arg6[%c0_10, %c0_11] : memref<8x128xf32, #tpu.memory_space<vmem>>, vector<8x128xf32>
      tpu.vector_store %arg6[%c0_10, %c0_11], %11 {strides = array<i32>} : memref<8x128xf32, #tpu.memory_space<vmem>>, vector<8x128xf32>,
    } else {
    }
    %c0 = arith.constant 0 : index
    %c0_1 = arith.constant 0 : index
    %3 = vector.load %arg6[%c0, %c0_1] : memref<8x128xf32, #tpu.memory_space<vmem>>, vector<8x128xf32>
    %c0_2 = arith.constant 0 : index
    %c0_3 = arith.constant 0 : index
    %4 = vector.load %arg3[%c0_2, %c0_3] : memref<8x128xf32, #tpu.memory_space<vmem>>, vector<8x128xf32>
    %c0_4 = arith.constant 0 : index
    %c0_5 = arith.constant 0 : index
    %5 = vector.load %arg4[%c0_4, %c0_5] : memref<128x128xf32, #tpu.memory_space<vmem>>, vector<128x128xf32>
    %cst = arith.constant dense<0.000000e+00> : vector<8x128xf32>
    %6 = tpu.matmul %4, %5, %cst {dimension_numbers = #tpu.dot_dimension_numbers<[1], [0], [0], [1], [0, 0, 1, 1], [], []>} : vector<8x128xf32>, vector<128x128xf32>, vector<8x128xf32> -> vector<8x128xf32>
    %7 = arith.addf %3, %6 : vector<8x128xf32>
    %c0_6 = arith.constant 0 : index
    %c0_7 = arith.constant 0 : index
    %8 = vector.load %arg6[%c0_6, %c0_7] : memref<8x128xf32, #tpu.memory_space<vmem>>, vector<8x128xf32>
    tpu.vector_store %arg6[%c0_6, %c0_7], %7 {strides = array<i32>} : memref<8x128xf32, #tpu.memory_space<vmem>>, vector<8x128xf32>,
    return
  }
  func.func @transform_0(%arg0: i32, %arg1: i32, %arg2: i32) -> (i32, i32) {
    %c0_i32 = arith.constant 0 : i32
    return %arg0, %arg2 : i32, i32
  }
  func.func @transform_1(%arg0: i32, %arg1: i32, %arg2: i32) -> (i32, i32) {
    %c0_i32 = arith.constant 0 : i32
    return %arg2, %arg1 : i32, i32
  }
  func.func @transform_2(%arg0: i32, %arg1: i32, %arg2: i32) -> (i32, i32) {
    %c0_i32 = arith.constant 0 : i32
    %c0_i32_0 = arith.constant 0 : i32
    return %c0_i32, %arg1 : i32, i32
  }
  func.func @transform_3(%arg0: i32, %arg1: i32, %arg2: i32) -> (i32, i32) {
    %c0_i32 = arith.constant 0 : i32
    return %arg0, %arg1 : i32, i32
  }
}

</mosaic_0001>

<llo_original>
// kernel: tpu_custom_call.1
$region0: #{tpu_custom_call.1}
  #allocation0 [shape = 'u32[]', space=smem, size = 0x4, offset = 0x4, fixed_abs, tag = 'smem constant byte address 0x4 - core index']
  #allocation1 [shape = 'u32[144,128]{1,0:T(1,128)}', space=vmem, size = 0x12000, scoped, tag = 'internal scratch']
  %s0 = inlined_call_operand.hbm [shape: f32[8,128], index: 0, kind: input, shape index: {}]
  %s1 = inlined_call_operand.hbm [shape: f32[128,128], index: 1, kind: input, shape index: {}]
  %s2 = inlined_call_operand.vmem [shape: f32[1,128], index: 2, kind: input, shape index: {}]
  %s3 = inlined_call_operand.hbm [shape: f32[8,128], index: 3, kind: output, shape index: {}]
  %s4 = sld [smem:[#allocation0]]
  $region34: #{tpu_custom_call.1} parent=0
    _
  %s6 = ssub.s32 1, %s4
  %s7 = scalar_select 0, %s6, %s4
  $region1: #{tpu_custom_call.1} parent=0
    #allocation2 [shape = 'u8[4096]{0}', space=vmem, size = 0x1000, scoped, tag = 'input window, operand 0, single buffered']
    #allocation3 [shape = 's32[1]{0}', space=sflag, size = 0x4, scoped, tag = 'scoped memory for tpu_custom_call.1']
    #allocation4 [shape = 's32[1]{0}', space=sflag, size = 0x4, scoped, tag = 'scoped memory for tpu_custom_call.1']
    #allocation5 [shape = 'u8[65536]{0}', space=vmem, size = 0x10000, scoped, tag = 'input window, operand 1, single buffered']
    #allocation6 [shape = 's32[1]{0}', space=sflag, size = 0x4, scoped, tag = 'scoped memory for tpu_custom_call.1']
    #allocation7 [shape = 'u8[4096]{0}', space=vmem, size = 0x1000, scoped, tag = 'output window, operand 0, single buffered']
    %8 = vsyncpa [#allocation3], 0
    %9 = vsyncpa [#allocation6], 0
    %10 = vsyncpa [#allocation4], 0
    // Predicated region
    $region2: #{tpu_custom_call.1} parent=1 // pred_check
      _
    $region3: #{tpu_custom_call.1} parent=1 // pred_check_branch
      %12 = sbr.rel (0) target = $region5
    $region4: #{tpu_custom_call.1} parent=1 // pred_region
      %s14 = ssub.s32 128, 128
      %15 = vsyncadd [#allocation3], %s14
      %s17 = sshll.u32 [#allocation2], 4
      %s18 = int_to_ptr.vmem [resolvable:$true] %s17
      %20 = dma.hbm_to_vmem [thread:$0]  %s0, 128, %s18, [#allocation3]
    $region5: #{tpu_custom_call.1} parent=1 // pred_fallthru
      _
    // Predicated region
    $region6: #{tpu_custom_call.1} parent=1 // pred_check
      _
    $region7: #{tpu_custom_call.1} parent=1 // pred_check_branch
      %22 = sbr.rel (0) target = $region9
    $region8: #{tpu_custom_call.1} parent=1 // pred_region
      %s24 = ssub.s32 2048, 2048
      %25 = vsyncadd [#allocation6], %s24
      %s26 = sshll.u32 [#allocation5], 4
      %s27 = int_to_ptr.vmem [resolvable:$true] %s26
      %32 = dma.hbm_to_vmem [thread:$0]  %s1, 2048, %s27, [#allocation6], 128, 128, 8
    $region9: #{tpu_custom_call.1} parent=1 // pred_fallthru
      _
    // Predicated region
    $region10: #{tpu_custom_call.1} parent=1 // pred_check
      _
    $region11: #{tpu_custom_call.1} parent=1 // pred_check_branch
      %34 = sbr.rel (0) target = $region13
    $region12: #{tpu_custom_call.1} parent=1 // pred_region
      _
    $region13: #{tpu_custom_call.1} parent=1 // pred_fallthru
      _
    // Predicated region
    $region14: #{tpu_custom_call.1} parent=1 // pred_check
      _
    $region15: #{tpu_custom_call.1} parent=1 // pred_check_branch
      %36 = sbr.rel (0) target = $region17
    $region16: #{tpu_custom_call.1} parent=1 // pred_region
      %37 = dma.done [#allocation3], 128
    $region17: #{tpu_custom_call.1} parent=1 // pred_fallthru
      _
    // Predicated region
    $region18: #{tpu_custom_call.1} parent=1 // pred_check
      _
    $region19: #{tpu_custom_call.1} parent=1 // pred_check_branch
      %39 = sbr.rel (0) target = $region21
    $region20: #{tpu_custom_call.1} parent=1 // pred_region
      %40 = dma.done [#allocation6], 2048
    $region21: #{tpu_custom_call.1} parent=1 // pred_fallthru
      _
    %p41 = scmp.eq.s32.totalorder 0, 0
    // Predicated region
    $region22: #{tpu_custom_call.1} parent=1 // pred_check
      %p42 = pneg %p41
    $region23: #{tpu_custom_call.1} parent=1 // pred_check_branch
      %44 = sbr.rel (%p42) target = $region25
    $region24: #{tpu_custom_call.1} parent=1 // pred_region
      %v45 = vld [vmem:[%s2] sm:$0x1]
      %v47 = vlaneseq
      %v48 = vshrl.u32 %v47, 7
      %v49 = vsub.s32 0, %v48
      %v50 = vrot.slane %v45, %v49
      %52 = vst [vmem:[#allocation7] sm:$0xff] %v50
    $region25: #{tpu_custom_call.1} parent=1 // pred_fallthru
      _
    %v53 = vld [vmem:[#allocation7] sm:$0xff]
    %v54 = vld [vmem:[#allocation2] sm:$0xff]
    %v55 = vld [vmem:[#allocation5] sm:$0xff]
    %v56 = vld [vmem:[#allocation5 + $0x8] sm:$0xff]
    %v57 = vld [vmem:[#allocation5 + $0x10] sm:$0xff]
    %v58 = vld [vmem:[#allocation5 + $0x18] sm:$0xff]
    %v59 = vld [vmem:[#allocation5 + $0x20] sm:$0xff]
    %v60 = vld [vmem:[#allocation5 + $0x28] sm:$0xff]
    %v61 = vld [vmem:[#allocation5 + $0x30] sm:$0xff]
    %v62 = vld [vmem:[#allocation5 + $0x38] sm:$0xff]
    %v63 = vld [vmem:[#allocation5 + $0x40] sm:$0xff]
    %v64 = vld [vmem:[#allocation5 + $0x48] sm:$0xff]
    %v65 = vld [vmem:[#allocation5 + $0x50] sm:$0xff]
    %v66 = vld [vmem:[#allocation5 + $0x58] sm:$0xff]
    %v67 = vld [vmem:[#allocation5 + $0x60] sm:$0xff]
    %v68 = vld [vmem:[#allocation5 + $0x68] sm:$0xff]
    %v69 = vld [vmem:[#allocation5 + $0x70] sm:$0xff]
    %v70 = vld [vmem:[#allocation5 + $0x78] sm:$0xff]
    %71 = vmatprep.subr.mxu0 0.0
    %72 = vmatpush1.msra.mxu0 %v55
    %73 = vmatprep.subr.mxu0 0.0
    %74 = vmatpush1.msra.mxu0 %v56
    %75 = vmatprep.subr.mxu0 0.0
    %76 = vmatpush1.msra.mxu0 %v57
    %77 = vmatprep.subr.mxu0 0.0
    %78 = vmatpush1.msra.mxu0 %v58
    %79 = vmatprep.subr.mxu0 0.0
    %80 = vmatpush1.msra.mxu0 %v59
    %81 = vmatprep.subr.mxu0 0.0
    %82 = vmatpush1.msra.mxu0 %v60
    %83 = vmatprep.subr.mxu0 0.0
    %84 = vmatpush1.msra.mxu0 %v61
    %85 = vmatprep.subr.mxu0 0.0
    %86 = vmatpush1.msra.mxu0 %v62
    %87 = vmatprep.subr.mxu0 0.0
    %88 = vmatpush1.msra.mxu0 %v63
    %89 = vmatprep.subr.mxu0 0.0
    %90 = vmatpush1.msra.mxu0 %v64
    %91 = vmatprep.subr.mxu0 0.0
    %92 = vmatpush1.msra.mxu0 %v65
    %93 = vmatprep.subr.mxu0 0.0
    %94 = vmatpush1.msra.mxu0 %v66
    %95 = vmatprep.subr.mxu0 0.0
    %96 = vmatpush1.msra.mxu0 %v67
    %97 = vmatprep.subr.mxu0 0.0
    %98 = vmatpush1.msra.mxu0 %v68
    %99 = vmatprep.subr.mxu0 0.0
    %100 = vmatpush1.msra.mxu0 %v69
    %101 = vmatprep.subr.mxu0 0.0
    %102 = vmatpush1.msra.mxu0 %v70
    %103 = vmatprep.subr.mxu0 0.0
    %104 = vmatpush1.msra.mxu0 0.0
    %105 = vmatprep.subr.mxu0 0.0
    %106 = vmatpush1.msra.mxu0 0.0
    %107 = vmatprep.subr.mxu0 0.0
    %108 = vmatpush1.msra.mxu0 0.0
    %109 = vmatprep.subr.mxu0 0.0
    %110 = vmatpush1.msra.mxu0 0.0
    %111 = vmatprep.subr.mxu0 0.0
    %112 = vmatpush1.msra.mxu0 0.0
    %113 = vmatprep.subr.mxu0 0.0
    %114 = vmatpush1.msra.mxu0 0.0
    %115 = vmatprep.subr.mxu0 0.0
    %116 = vmatpush1.msra.mxu0 0.0
    %117 = vmatprep.subr.mxu0 0.0
    %118 = vmatpush1.msra.mxu0 0.0
    %119 = vmatprep.subr.mxu0 0.0
    %120 = vmatpush1.msra.mxu0 0.0
    %121 = vmatprep.subr.mxu0 0.0
    %122 = vmatpush1.msra.mxu0 0.0
    %123 = vmatprep.subr.mxu0 0.0
    %124 = vmatpush1.msra.mxu0 0.0
    %125 = vmatprep.subr.mxu0 0.0
    %126 = vmatpush1.msra.mxu0 0.0
    %127 = vmatprep.subr.mxu0 0.0
    %128 = vmatpush1.msra.mxu0 0.0
    %129 = vmatprep.subr.mxu0 0.0
    %130 = vmatpush1.msra.mxu0 0.0
    %131 = vmatprep.subr.mxu0 0.0
    %132 = vmatpush1.msra.mxu0 0.0
    %133 = vmatprep.subr.mxu0 0.0
    %134 = vmatpush1.msra.mxu0 0.0
    %135 = vmatprep.mubr.f32.mxu0 0.0
    %136 = vmatmul.mubr.f32.gmra.mrb[0].mxu0 %v54
    %v137 = vpop.f32.mrb[0].mxu0
    %v138 = vadd.f32 0.0, %v137
    %v139 = vpop.f32.mrb[0].mxu0
    %140 = vdwg.mxu0
    %v141 = vadd.f32 %v53, %v138
    %142 = vst [vmem:[#allocation7] sm:$0xff] %v141
    // Predicated region
    $region26: #{tpu_custom_call.1} parent=1 // pred_check
      _
    $region27: #{tpu_custom_call.1} parent=1 // pred_check_branch
      %144 = sbr.rel (0) target = $region29
    $region28: #{tpu_custom_call.1} parent=1 // pred_region
      %s146 = ssub.s32 128, 128
      %147 = vsyncadd [#allocation4], %s146
      %s149 = sshll.u32 [#allocation7], 4
      %s150 = int_to_ptr.vmem [resolvable:$true] %s149
      %152 = dma.vmem_to_hbm [thread:$0]  %s150, 128, %s3, [#allocation4]
    $region29: #{tpu_custom_call.1} parent=1 // pred_fallthru
      _
    // Predicated region
    $region30: #{tpu_custom_call.1} parent=1 // pred_check
      _
    $region31: #{tpu_custom_call.1} parent=1 // pred_check_branch
      %154 = sbr.rel (0) target = $region33
    $region32: #{tpu_custom_call.1} parent=1 // pred_region
      %155 = dma.done [#allocation4], 128
    $region33: #{tpu_custom_call.1} parent=1 // pred_fallthru
      _
    %156 = vsyncpa [#allocation3], 1
    %157 = vsyncpa [#allocation6], 1
    %158 = vsyncpa [#allocation4], 1

</llo_original>
